<compile_context>
chip_gen: v6e
topology: v6e:2x2x1
jax: 0.10.0
libtpu: 0.0.40
codegen_flags: <defaults>
</compile_context>

<pallas_src>
import jax
import jax.numpy as jnp
from jax.experimental import pallas as pl
from jax.experimental.pallas import tpu as pltpu


# ----------------------------------------------------------------------------
# Path 1: zero-copy identity (the fastest kernel is no kernel).
# ----------------------------------------------------------------------------
def _noop_kernel(x_ref, o_ref):
    # Output aliases the input buffer; nothing to compute or move.
    del x_ref, o_ref


def fake_pos_emb(x: jax.Array) -> jax.Array:
    """Pallas equivalent of FakePosEmb.forward(x) == x, with no data movement."""
    return pl.pallas_call(
        _noop_kernel,
        out_shape=jax.ShapeDtypeStruct(x.shape, x.dtype),
        in_specs=[pl.BlockSpec(memory_space=pl.ANY)],
        out_specs=pl.BlockSpec(memory_space=pl.ANY),
        input_output_aliases={0: 0},
    )(x)


# ----------------------------------------------------------------------------
# Path 2: explicit tiled copy (only if a materialized copy is actually wanted).
# ----------------------------------------------------------------------------
def _copy_kernel(x_ref, o_ref):
    o_ref[...] = x_ref[...]


def fake_pos_emb_copy(x: jax.Array, *, target_block_bytes: int = 2 * 1024 * 1024) -> jax.Array:
    """Identity implemented as a lane-dense, multi-MiB tiled HBM copy."""
    orig_shape = x.shape
    hidden = orig_shape[-1]
    rows_total = x.size // hidden
    x2 = x.reshape(rows_total, hidden)
    itemsize = x.dtype.itemsize

    if rows_total % 8 == 0 and hidden % 128 == 0:
        # Row block: multiple of 8 sublanes, ~target_block_bytes per buffer so
        # double-buffered input + output (4 buffers) stays well under the
        # default scoped VMEM on v5e (16 MiB), v6e (32 MiB) and v7x (32 MiB).
        rows = max(8, (target_block_bytes // (hidden * itemsize)) // 8 * 8)
        rows = min(rows, rows_total)
    else:
        # Fall back to a single full-array block (always layout-legal).
        rows = rows_total

    grid = (pl.cdiv(rows_total, rows),)

    y2 = pl.pallas_call(
        _copy_kernel,
        out_shape=jax.ShapeDtypeStruct((rows_total, hidden), x.dtype),
        grid=grid,
        in_specs=[pl.BlockSpec((rows, hidden), lambda i: (i, 0))],
        out_specs=pl.BlockSpec((rows, hidden), lambda i: (i, 0)),
        compiler_params=pltpu.CompilerParams(
            dimension_semantics=("parallel",),
        ),
    )(x2)
    return y2.reshape(orig_shape)


if __name__ == "__main__":
    key = jax.random.PRNGKey(0)
    # (batch=2, seq=8, hidden=128): last dim lane-aligned to 128.
    x = jax.random.normal(key, (2, 8, 128), dtype=jnp.float32)

    # Zero-copy aliased identity.
    y = jax.block_until_ready(fake_pos_emb(x))
    assert y.shape == x.shape and y.dtype == x.dtype
    assert bool(jnp.all(y == x))

    # Explicit tiled-copy identity (benchmark path).
    y2 = jax.block_until_ready(fake_pos_emb_copy(x))
    assert y2.shape == x.shape and y2.dtype == x.dtype
    assert bool(jnp.all(y2 == x))

    print("KERNEL_OK")
</pallas_src>

<mosaic_0001>
module attributes {stable_mosaic.version = 11 : i64} {
  func.func @_noop_kernel(%arg0: memref<2x8x128xf32, #tpu.memory_space<any>>, %arg1: memref<2x8x128xf32, #tpu.memory_space<any>>) attributes {dimension_semantics = [], scalar_prefetch = 0 : i64, scratch_operands = 0 : i64, tpu.core_type = #tpu.core_type<tc>} {
    return
  }
}

</mosaic_0001>

<llo_original>
// kernel: tpu_custom_call.1
$region0: #{tpu_custom_call.1}
  #allocation0 [shape = 'u32[]', space=smem, size = 0x4, offset = 0x4, fixed_abs, tag = 'smem constant byte address 0x4 - core index']
  #allocation1 [shape = 'u32[144,128]{1,0:T(1,128)}', space=vmem, size = 0x12000, scoped, tag = 'internal scratch']
  %s0 = inlined_call_operand.hbm [shape: f32[2,8,128], index: 0, kind: input, shape index: {}, may-alias: {0,1}]
  %s1 = inlined_call_operand.hbm [shape: f32[2,8,128], index: 1, kind: output, shape index: {}, may-alias: {0,1}]
  %s2 = sld [smem:[#allocation0]]
  $region2: #{tpu_custom_call.1} parent=0
    _
  %s4 = ssub.s32 1, %s2
  %s5 = scalar_select 0, %s4, %s2

</llo_original>
